<compile_context>
chip_gen: v7x
topology: tpu7x:2x2x1
jax: 0.10.0
libtpu: 0.0.40
codegen_flags: <defaults>
</compile_context>

<pallas_src>
import math
from functools import partial

import jax
import jax.numpy as jnp
from jax.experimental import pallas as pl
from jax.experimental.pallas import tpu as pltpu

HIDDEN = 128
BN_EPS = 1e-5
LEAKY_SLOPE = 0.01                      # PyTorch F.leaky_relu default
_X_CACHE_CAP_BYTES = 8 * 1024 * 1024    # VMEM budget for the cached x tiles


def _round_up(n, m):
    return (n + m - 1) // m * m


def _leaky_relu(x):
    return jnp.where(x > 0, x, LEAKY_SLOPE * x)


# ---------------------------------------------------------------------------
# Fused kernel.  grid = (phase, batch_tile):
#   phase 0: shifted sum / sum-of-squares over the true batch (+ x tile cache),
#            finalized on the last tile by folding (mean, inv_std) into fc1.
#   phase 1: x @ w1' -> lrelu -> @ w2 -> lrelu -> @ w3 -> tanh, narrow store.
# ---------------------------------------------------------------------------
def _actor_fused_kernel(n_ref,                                    # SMEM: true B
                        x_ref, w1_ref, b1_ref, w2_ref, b2_ref, w3_ref, b3_ref,
                        o_ref,
                        xcache_ref, stats_ref, shift_ref, w1f_ref, b1f_ref,
                        *, block_b, use_cache):
    p = pl.program_id(0)            # 0: BN statistics sweep, 1: fused MLP sweep
    j = pl.program_id(1)            # batch tile index
    n_tiles = pl.num_programs(1)

    # --------------------------- phase 0: statistics ------------------------
    @pl.when(p == 0)
    def _stats_phase():
        x = x_ref[...]

        @pl.when(j == 0)
        def _init():
            stats_ref[...] = jnp.zeros_like(stats_ref)
            shift_ref[...] = x[0:1, :]          # per-feature shift (1st sample)

        n_true = n_ref[0]
        shift = shift_ref[...]
        # Mask padded rows (they would otherwise contribute -shift).
        row = j * block_b + jax.lax.broadcasted_iota(jnp.int32, x.shape, 0)
        xs = jnp.where(row < n_true, x - shift, 0.0)
        part = jnp.concatenate(
            [jnp.sum(xs, axis=0, keepdims=True),
             jnp.sum(xs * xs, axis=0, keepdims=True)], axis=0)        # (2, S)
        stats_ref[...] = stats_ref[...] + part   # single full-block update

        if use_cache:
            xcache_ref[j] = x                    # keep the tile for phase 1

        @pl.when(j == n_tiles - 1)
        def _finalize():
            n_f = n_true.astype(jnp.float32)
            m = stats_ref[...] / n_f             # [E[x-s]; E[(x-s)^2]]
            m1 = m[0:1, :]
            mean = shift_ref[...] + m1
            var = m[1:2, :] - m1 * m1            # biased (training) variance
            inv_std = jax.lax.rsqrt(var + BN_EPS)

            # Fold (mean, inv_std) into fc1: w1' = diag(inv_std) @ w1,
            # b1' = b1 - mean @ w1'.  diag built with iota (no transpose).
            s = w1_ref.shape[0]
            rr = jax.lax.broadcasted_iota(jnp.int32, (s, s), 0)
            cc = jax.lax.broadcasted_iota(jnp.int32, (s, s), 1)
            diag = jnp.where(rr == cc, jnp.broadcast_to(inv_std, (s, s)), 0.0)
            w1f = jnp.dot(diag, w1_ref[...], preferred_element_type=jnp.float32)
            w1f_ref[...] = w1f
            b1f_ref[...] = b1_ref[...] - jnp.dot(
                mean, w1f, preferred_element_type=jnp.float32)

    # --------------------------- phase 1: fused MLP --------------------------
    @pl.when(p == 1)
    def _mlp_phase():
        if use_cache:
            x = xcache_ref[j]
        else:
            x = x_ref[...]
        h1 = _leaky_relu(
            jnp.dot(x, w1f_ref[...], preferred_element_type=jnp.float32)
            + b1f_ref[...])
        h2 = _leaky_relu(
            jnp.dot(h1, w2_ref[...], preferred_element_type=jnp.float32)
            + b2_ref[...])
        h3 = jnp.dot(h2, w3_ref[...], preferred_element_type=jnp.float32) + b3_ref[...]
        o_ref[...] = jnp.tanh(h3).astype(o_ref.dtype)


def _prepare_params(params):
    """Fold the BatchNorm affine (gamma, beta) into fc1."""
    gamma = params["gamma"].reshape(-1)             # (S,)
    beta = params["beta"].reshape(1, -1)            # (1, S)
    w1 = params["w1"]
    w1g = w1 * gamma[:, None]                       # row-scale by gamma
    b1g = params["b1"] + beta @ w1                  # (1, HIDDEN)
    # Per review: keep weights f32; compute/weight bytes are nowhere near the
    # roofline (the kernel is HBM + step-overhead bound), so bf16 buys nothing.
    return w1g, b1g, params["w2"], params["b2"], params["w3"], params["b3"]


def actor_forward(x, params, *, max_block_b=4096):
    """x: (B, state_size) float32. params: dict from init_params."""
    B, S = x.shape
    A = params["w3"].shape[1]
    w1g, b1g, w2, b2, w3, b3 = _prepare_params(params)

    # Large batch tiles (per-step work >> ~0.35us step overhead), rebalanced so
    # padding waste is minimal.
    max_block_b = _round_up(max_block_b, 8)
    block_b = min(max_block_b, _round_up(B, 8))
    n_tiles = -(-B // block_b)
    block_b = _round_up(-(-B // n_tiles), 8)
    B_pad = block_b * n_tiles
    x_in = jnp.pad(x, ((0, B_pad - B), (0, 0))) if B_pad != B else x

    # Cache x tiles in VMEM during phase 0 so phase 1 never re-reads HBM.
    lane_bytes = _round_up(S, 128) * 4              # VMEM lane padding
    cache_bytes = n_tiles * block_b * lane_bytes
    use_cache = (n_tiles > 1) and (cache_bytes <= _X_CACHE_CAP_BYTES)
    cache_shape = (n_tiles, block_b, S) if use_cache else (1, 8, 128)

    if use_cache:
        # Phase 0 walks the batch tiles; phase 1 parks the (unused) x window on
        # the last tile so no further x DMAs are issued.
        x_map = lambda ph, i, n: (i * (1 - ph) + (n_tiles - 1) * ph, 0)
    else:
        # Fallback (cache would not fit): phase 1 re-reads x via the same spec.
        x_map = lambda ph, i, n: (i, 0)
    res = lambda ph, i, n: (0, 0)                   # resident weights / biases
    out_map = lambda ph, i, n: (ph * i, 0)          # only written in phase 1

    kernel = partial(_actor_fused_kernel, block_b=block_b, use_cache=use_cache)

    out = pl.pallas_call(
        kernel,
        out_shape=jax.ShapeDtypeStruct((B_pad, A), jnp.float32),
        grid_spec=pltpu.PrefetchScalarGridSpec(
            num_scalar_prefetch=1,                  # true batch size (SMEM)
            grid=(2, n_tiles),                      # (phase, batch tile)
            in_specs=[
                pl.BlockSpec((block_b, S), x_map),      # x tile
                pl.BlockSpec((S, HIDDEN), res),         # w1 (gamma folded)
                pl.BlockSpec((1, HIDDEN), res),         # b1 (beta folded)
                pl.BlockSpec((HIDDEN, HIDDEN), res),    # w2
                pl.BlockSpec((1, HIDDEN), res),         # b2
                pl.BlockSpec((HIDDEN, A), res),         # w3 (narrow, no pad)
                pl.BlockSpec((1, A), res),              # b3
            ],
            out_specs=pl.BlockSpec((block_b, A), out_map),
            scratch_shapes=[
                pltpu.VMEM(cache_shape, jnp.float32),   # x tile cache
                pltpu.VMEM((2, S), jnp.float32),        # [sum; sumsq]
                pltpu.VMEM((1, S), jnp.float32),        # shift
                pltpu.VMEM((S, HIDDEN), jnp.float32),   # w1 with BN folded
                pltpu.VMEM((1, HIDDEN), jnp.float32),   # b1 with BN folded
            ]),
        compiler_params=pltpu.CompilerParams(
            # Phase 0 is a cross-tile reduction feeding phase 1 -> both axes
            # are sequential.  Raise the scoped-VMEM limit so 4096-row tiles
            # fit v5e's 16 MiB default (still well under v7x's 64 MiB VMEM).
            dimension_semantics=("arbitrary", "arbitrary"),
            vmem_limit_bytes=32 * 1024 * 1024),
    )(jnp.array([B], dtype=jnp.int32), x_in, w1g, b1g, w2, b2, w3, b3)

    return out[:B, :] if B_pad != B else out


def init_params(key, state_size, action_size):
    """Init mirroring Actor.__init__ shapes / ranges (PyTorch layout quirks).

    hidden_init() in the reference uses weight.size()[0] == out_features as
    "fan_in" (128 for fc1/fc2); reproduced here.
    """
    ks = jax.random.split(key, 6)

    lim_hidden = 1.0 / math.sqrt(HIDDEN)
    lim_b1 = 1.0 / math.sqrt(state_size)    # default Linear bias init
    lim_b2 = 1.0 / math.sqrt(HIDDEN)
    lim_b3 = 1.0 / math.sqrt(HIDDEN)

    def u(k, shape, lim):
        return jax.random.uniform(k, shape, jnp.float32, -lim, lim)

    return {
        # BatchNorm1d affine params (default: weight=1, bias=0)
        "gamma": jnp.ones((1, state_size), jnp.float32),
        "beta": jnp.zeros((1, state_size), jnp.float32),
        # Linear weights stored as (in, out)
        "w1": u(ks[0], (state_size, HIDDEN), lim_hidden),
        "b1": u(ks[1], (1, HIDDEN), lim_b1),
        "w2": u(ks[2], (HIDDEN, HIDDEN), lim_hidden),
        "b2": u(ks[3], (1, HIDDEN), lim_b2),
        "w3": u(ks[4], (HIDDEN, action_size), 0.003),
        "b3": u(ks[5], (1, action_size), lim_b3),
    }


def actor_forward_ref(x, params):
    """Pure-JAX reference for correctness checking."""
    mean = jnp.mean(x, axis=0, keepdims=True)
    var = jnp.mean((x - mean) ** 2, axis=0, keepdims=True)
    xn = (x - mean) / jnp.sqrt(var + BN_EPS)
    xn = xn * params["gamma"] + params["beta"]
    h1 = _leaky_relu(xn @ params["w1"] + params["b1"])
    h2 = _leaky_relu(h1 @ params["w2"] + params["b2"])
    return jnp.tanh(h2 @ params["w3"] + params["b3"])


if __name__ == "__main__":
    key = jax.random.PRNGKey(0)
    k_x, k_p, k_x2 = jax.random.split(key, 3)

    state_size, action_size = 32, 4
    params = init_params(k_p, state_size, action_size)

    # Small batch: single tile, grid (2, 1), no padding.
    x = jax.random.normal(k_x, (8, state_size), jnp.float32)
    out = jax.block_until_ready(actor_forward(x, params))
    ref = actor_forward_ref(x, params)
    assert out.shape == (8, action_size)
    assert jnp.allclose(out, ref, atol=1e-4, rtol=1e-4), "mismatch (small batch)"

    # Larger ragged batch with non-zero feature means: exercises the VMEM x
    # cache, row masking of padded rows, multi-tile shifted-stat accumulation
    # and the narrow (B, action_size) output (B=1000 -> block 256, 4 tiles).
    x2 = jax.random.normal(k_x2, (1000, state_size), jnp.float32) * 3.0 + 5.0
    out2 = jax.block_until_ready(actor_forward(x2, params, max_block_b=256))
    ref2 = actor_forward_ref(x2, params)
    assert out2.shape == (1000, action_size)
    assert jnp.allclose(out2, ref2, atol=1e-4, rtol=1e-4), "mismatch (tiled batch)"

    print("KERNEL_OK")
</pallas_src>

<mosaic_0001>
module attributes {stable_mosaic.version = 11 : i64} {
  func.func @_actor_fused_kernel(%arg0: i32, %arg1: i32, %arg2: memref<1xi32, #tpu.memory_space<smem>>, %arg3: memref<8x32xf32, #tpu.memory_space<vmem>>, %arg4: memref<32x128xf32, #tpu.memory_space<vmem>>, %arg5: memref<1x128xf32, #tpu.memory_space<vmem>>, %arg6: memref<128x128xf32, #tpu.memory_space<vmem>>, %arg7: memref<1x128xf32, #tpu.memory_space<vmem>>, %arg8: memref<128x4xf32, #tpu.memory_space<vmem>>, %arg9: memref<1x4xf32, #tpu.memory_space<vmem>>, %arg10: memref<8x4xf32, #tpu.memory_space<vmem>>, %arg11: memref<1x8x128xf32, #tpu.memory_space<vmem>>, %arg12: memref<2x32xf32, #tpu.memory_space<vmem>>, %arg13: memref<1x32xf32, #tpu.memory_space<vmem>>, %arg14: memref<32x128xf32, #tpu.memory_space<vmem>>, %arg15: memref<1x128xf32, #tpu.memory_space<vmem>>) attributes {dimension_semantics = [#tpu.dimension_semantics<arbitrary>, #tpu.dimension_semantics<arbitrary>], iteration_bounds = array<i64: 2, 1>, scalar_prefetch = 1 : i64, scratch_operands = 5 : i64, tpu.core_type = #tpu.core_type<tc>, window_params = [{transform_indices = @transform_0, window_bounds = array<i64: 8, 32>}, {pipeline_mode = #tpu.pipeline_mode<synchronous>, transform_indices = @transform_1, window_bounds = array<i64: 32, 128>}, {pipeline_mode = #tpu.pipeline_mode<synchronous>, transform_indices = @transform_2, window_bounds = array<i64: 1, 128>}, {pipeline_mode = #tpu.pipeline_mode<synchronous>, transform_indices = @transform_3, window_bounds = array<i64: 128, 128>}, {pipeline_mode = #tpu.pipeline_mode<synchronous>, transform_indices = @transform_4, window_bounds = array<i64: 1, 128>}, {pipeline_mode = #tpu.pipeline_mode<synchronous>, transform_indices = @transform_5, window_bounds = array<i64: 128, 4>}, {pipeline_mode = #tpu.pipeline_mode<synchronous>, transform_indices = @transform_6, window_bounds = array<i64: 1, 4>}, {transform_indices = @transform_7, window_bounds = array<i64: 8, 4>}]} {
    %c0_i32 = arith.constant 0 : i32
    %0 = arith.cmpi eq, %arg0, %c0_i32 : i32
    %1 = arith.extui %0 : i1 to i32
    %c0_i32_0 = arith.constant 0 : i32
    %2 = arith.cmpi ne, %1, %c0_i32_0 : i32
    scf.if %2 {
      %c0 = arith.constant 0 : index
      %c0_2 = arith.constant 0 : index
      %6 = vector.load %arg3[%c0, %c0_2] : memref<8x32xf32, #tpu.memory_space<vmem>>, vector<8x32xf32>
      %c0_i32_3 = arith.constant 0 : i32
      %7 = arith.cmpi eq, %arg1, %c0_i32_3 : i32
      %8 = arith.extui %7 : i1 to i32
      %c0_i32_4 = arith.constant 0 : i32
      %9 = arith.cmpi ne, %8, %c0_i32_4 : i32
      scf.if %9 {
        %cst_16 = arith.constant 0.000000e+00 : f32
        %34 = vector.broadcast %cst_16 : f32 to vector<2x32xf32>
        %c0_17 = arith.constant 0 : index
        %c0_18 = arith.constant 0 : index
        %35 = vector.load %arg12[%c0_17, %c0_18] : memref<2x32xf32, #tpu.memory_space<vmem>>, vector<2x32xf32>
        tpu.vector_store %arg12[%c0_17, %c0_18], %34 {strides = array<i32>} : memref<2x32xf32, #tpu.memory_space<vmem>>, vector<2x32xf32>,
        %36 = vector.extract_strided_slice %6 {offsets = [0, 0], sizes = [1, 32], strides = [1, 1]} : vector<8x32xf32> to vector<1x32xf32>
        %c0_19 = arith.constant 0 : index
        %c0_20 = arith.constant 0 : index
        %37 = vector.load %arg13[%c0_19, %c0_20] : memref<1x32xf32, #tpu.memory_space<vmem>>, vector<1x32xf32>
        tpu.vector_store %arg13[%c0_19, %c0_20], %36 {strides = array<i32>} : memref<1x32xf32, #tpu.memory_space<vmem>>, vector<1x32xf32>,
      } else {
      }
      %c0_5 = arith.constant 0 : index
      %10 = memref.load %arg2[%c0_5] : memref<1xi32, #tpu.memory_space<smem>>
      %c0_6 = arith.constant 0 : index
      %c0_7 = arith.constant 0 : index
      %11 = vector.load %arg13[%c0_6, %c0_7] : memref<1x32xf32, #tpu.memory_space<vmem>>, vector<1x32xf32>
      %c8_i32 = arith.constant 8 : i32
      %12 = arith.muli %arg1, %c8_i32 : i32
      %13 = tpu.iota {dimensions = array<i32: 0>} : vector<8x32xi32>
      %14 = vector.broadcast %12 : i32 to vector<8x32xi32>
      %15 = arith.addi %14, %13 : vector<8x32xi32>
      %16 = vector.broadcast %10 : i32 to vector<8x32xi32>
      %17 = arith.cmpi slt, %15, %16 : vector<8x32xi32>
      %18 = vector.broadcast %11 : vector<1x32xf32> to vector<8x32xf32>
      %19 = arith.subf %6, %18 : vector<8x32xf32>
      %cst = arith.constant 0.000000e+00 : f32
      %20 = vector.broadcast %cst : f32 to vector<8x32xf32>
      %21 = arith.select %17, %19, %20 : vector<8x32xi1>, vector<8x32xf32>
      %cst_8 = arith.constant dense<0.000000e+00> : vector<32xf32>
      %22 = vector.multi_reduction <add>, %21, %cst_8 [0] : vector<8x32xf32> to vector<32xf32>
      %23 = vector.shape_cast %22 : vector<32xf32> to vector<1x32xf32>
      %24 = arith.mulf %21, %21 : vector<8x32xf32>
      %cst_9 = arith.constant dense<0.000000e+00> : vector<32xf32>
      %25 = vector.multi_reduction <add>, %24, %cst_9 [0] : vector<8x32xf32> to vector<32xf32>
      %26 = vector.shape_cast %25 : vector<32xf32> to vector<1x32xf32>
      %27 = tpu.concatenate %23, %26 in 0 : vector<1x32xf32>, vector<1x32xf32> -> vector<2x32xf32>
      %c0_10 = arith.constant 0 : index
      %c0_11 = arith.constant 0 : index
      %28 = vector.load %arg12[%c0_10, %c0_11] : memref<2x32xf32, #tpu.memory_space<vmem>>, vector<2x32xf32>
      %29 = arith.addf %28, %27 : vector<2x32xf32>
      %c0_12 = arith.constant 0 : index
      %c0_13 = arith.constant 0 : index
      %30 = vector.load %arg12[%c0_12, %c0_13] : memref<2x32xf32, #tpu.memory_space<vmem>>, vector<2x32xf32>
      tpu.vector_store %arg12[%c0_12, %c0_13], %29 {strides = array<i32>} : memref<2x32xf32, #tpu.memory_space<vmem>>, vector<2x32xf32>,
      %c0_i32_14 = arith.constant 0 : i32
      %31 = arith.cmpi eq, %arg1, %c0_i32_14 : i32
      %32 = arith.extui %31 : i1 to i32
      %c0_i32_15 = arith.constant 0 : i32
      %33 = arith.cmpi ne, %32, %c0_i32_15 : i32
      scf.if %33 {
        %34 = arith.sitofp %10 : i32 to f32
        %c0_16 = arith.constant 0 : index
        %c0_17 = arith.constant 0 : index
        %35 = vector.load %arg12[%c0_16, %c0_17] : memref<2x32xf32, #tpu.memory_space<vmem>>, vector<2x32xf32>
        %36 = vector.broadcast %34 : f32 to vector<2x32xf32>
        %37 = arith.divf %35, %36 : vector<2x32xf32>
        %38 = vector.extract_strided_slice %37 {offsets = [0, 0], sizes = [1, 32], strides = [1, 1]} : vector<2x32xf32> to vector<1x32xf32>
        %c0_18 = arith.constant 0 : index
        %c0_19 = arith.constant 0 : index
        %39 = vector.load %arg13[%c0_18, %c0_19] : memref<1x32xf32, #tpu.memory_space<vmem>>, vector<1x32xf32>
        %40 = arith.addf %39, %38 : vector<1x32xf32>
        %41 = vector.extract_strided_slice %37 {offsets = [1, 0], sizes = [1, 32], strides = [1, 1]} : vector<2x32xf32> to vector<1x32xf32>
        %42 = arith.mulf %38, %38 : vector<1x32xf32>
        %43 = arith.subf %41, %42 : vector<1x32xf32>
        %cst_20 = arith.constant 9.99999974E-6 : f32
        %44 = vector.broadcast %cst_20 : f32 to vector<1x32xf32>
        %45 = arith.addf %43, %44 : vector<1x32xf32>
        %46 = math.rsqrt %45 : vector<1x32xf32>
        %47 = tpu.iota {dimensions = array<i32: 0>} : vector<32x32xi32>
        %48 = tpu.iota {dimensions = array<i32: 1>} : vector<32x32xi32>
        %49 = arith.cmpi eq, %47, %48 : vector<32x32xi32>
        %50 = vector.shape_cast %46 : vector<1x32xf32> to vector<1x32xf32>
        %51 = vector.broadcast %50 : vector<1x32xf32> to vector<32x32xf32>
        %cst_21 = arith.constant 0.000000e+00 : f32
        %52 = vector.broadcast %cst_21 : f32 to vector<32x32xf32>
        %53 = arith.select %49, %51, %52 : vector<32x32xi1>, vector<32x32xf32>
        %c0_22 = arith.constant 0 : index
        %c0_23 = arith.constant 0 : index
        %54 = vector.load %arg4[%c0_22, %c0_23] : memref<32x128xf32, #tpu.memory_space<vmem>>, vector<32x128xf32>
        %cst_24 = arith.constant dense<0.000000e+00> : vector<32x128xf32>
        %55 = tpu.matmul %53, %54, %cst_24 {dimension_numbers = #tpu.dot_dimension_numbers<[1], [0], [0], [1], [0, 0, 1, 1], [], []>} : vector<32x32xf32>, vector<32x128xf32>, vector<32x128xf32> -> vector<32x128xf32>
        %c0_25 = arith.constant 0 : index
        %c0_26 = arith.constant 0 : index
        %56 = vector.load %arg14[%c0_25, %c0_26] : memref<32x128xf32, #tpu.memory_space<vmem>>, vector<32x128xf32>
        tpu.vector_store %arg14[%c0_25, %c0_26], %55 {strides = array<i32>} : memref<32x128xf32, #tpu.memory_space<vmem>>, vector<32x128xf32>,
        %c0_27 = arith.constant 0 : index
        %c0_28 = arith.constant 0 : index
        %57 = vector.load %arg5[%c0_27, %c0_28] : memref<1x128xf32, #tpu.memory_space<vmem>>, vector<1x128xf32>
        %cst_29 = arith.constant dense<0.000000e+00> : vector<1x128xf32>
        %58 = tpu.matmul %40, %55, %cst_29 {dimension_numbers = #tpu.dot_dimension_numbers<[1], [0], [0], [1], [0, 0, 1, 1], [], []>} : vector<1x32xf32>, vector<32x128xf32>, vector<1x128xf32> -> vector<1x128xf32>
        %59 = arith.subf %57, %58 : vector<1x128xf32>
        %c0_30 = arith.constant 0 : index
        %c0_31 = arith.constant 0 : index
        %60 = vector.load %arg15[%c0_30, %c0_31] : memref<1x128xf32, #tpu.memory_space<vmem>>, vector<1x128xf32>
        tpu.vector_store %arg15[%c0_30, %c0_31], %59 {strides = array<i32>} : memref<1x128xf32, #tpu.memory_space<vmem>>, vector<1x128xf32>,
      } else {
      }
    } else {
    }
    %c1_i32 = arith.constant 1 : i32
    %3 = arith.cmpi eq, %arg0, %c1_i32 : i32
    %4 = arith.extui %3 : i1 to i32
    %c0_i32_1 = arith.constant 0 : i32
    %5 = arith.cmpi ne, %4, %c0_i32_1 : i32
    scf.if %5 {
      %c0 = arith.constant 0 : index
      %c0_2 = arith.constant 0 : index
      %6 = vector.load %arg3[%c0, %c0_2] : memref<8x32xf32, #tpu.memory_space<vmem>>, vector<8x32xf32>
      %c0_3 = arith.constant 0 : index
      %c0_4 = arith.constant 0 : index
      %7 = vector.load %arg14[%c0_3, %c0_4] : memref<32x128xf32, #tpu.memory_space<vmem>>, vector<32x128xf32>
      %cst = arith.constant dense<0.000000e+00> : vector<8x128xf32>
      %8 = tpu.matmul %6, %7, %cst {dimension_numbers = #tpu.dot_dimension_numbers<[1], [0], [0], [1], [0, 0, 1, 1], [], []>} : vector<8x32xf32>, vector<32x128xf32>, vector<8x128xf32> -> vector<8x128xf32>
      %c0_5 = arith.constant 0 : index
      %c0_6 = arith.constant 0 : index
      %9 = vector.load %arg15[%c0_5, %c0_6] : memref<1x128xf32, #tpu.memory_space<vmem>>, vector<1x128xf32>
      %10 = vector.broadcast %9 : vector<1x128xf32> to vector<8x128xf32>
      %11 = arith.addf %8, %10 : vector<8x128xf32>
      %cst_7 = arith.constant 0.000000e+00 : f32
      %12 = vector.broadcast %cst_7 : f32 to vector<8x128xf32>
      %13 = arith.cmpf ogt, %11, %12 : vector<8x128xf32>
      %cst_8 = arith.constant 0.00999999977 : f32
      %14 = vector.broadcast %cst_8 : f32 to vector<8x128xf32>
      %15 = arith.mulf %14, %11 : vector<8x128xf32>
      %16 = arith.select %13, %11, %15 : vector<8x128xi1>, vector<8x128xf32>
      %c0_9 = arith.constant 0 : index
      %c0_10 = arith.constant 0 : index
      %17 = vector.load %arg6[%c0_9, %c0_10] : memref<128x128xf32, #tpu.memory_space<vmem>>, vector<128x128xf32>
      %cst_11 = arith.constant dense<0.000000e+00> : vector<8x128xf32>
      %18 = tpu.matmul %16, %17, %cst_11 {dimension_numbers = #tpu.dot_dimension_numbers<[1], [0], [0], [1], [0, 0, 1, 1], [], []>} : vector<8x128xf32>, vector<128x128xf32>, vector<8x128xf32> -> vector<8x128xf32>
      %c0_12 = arith.constant 0 : index
      %c0_13 = arith.constant 0 : index
      %19 = vector.load %arg7[%c0_12, %c0_13] : memref<1x128xf32, #tpu.memory_space<vmem>>, vector<1x128xf32>
      %20 = vector.broadcast %19 : vector<1x128xf32> to vector<8x128xf32>
      %21 = arith.addf %18, %20 : vector<8x128xf32>
      %cst_14 = arith.constant 0.000000e+00 : f32
      %22 = vector.broadcast %cst_14 : f32 to vector<8x128xf32>
      %23 = arith.cmpf ogt, %21, %22 : vector<8x128xf32>
      %cst_15 = arith.constant 0.00999999977 : f32
      %24 = vector.broadcast %cst_15 : f32 to vector<8x128xf32>
      %25 = arith.mulf %24, %21 : vector<8x128xf32>
      %26 = arith.select %23, %21, %25 : vector<8x128xi1>, vector<8x128xf32>
      %c0_16 = arith.constant 0 : index
      %c0_17 = arith.constant 0 : index
      %27 = vector.load %arg8[%c0_16, %c0_17] : memref<128x4xf32, #tpu.memory_space<vmem>>, vector<128x4xf32>
      %cst_18 = arith.constant dense<0.000000e+00> : vector<8x4xf32>
      %28 = tpu.matmul %26, %27, %cst_18 {dimension_numbers = #tpu.dot_dimension_numbers<[1], [0], [0], [1], [0, 0, 1, 1], [], []>} : vector<8x128xf32>, vector<128x4xf32>, vector<8x4xf32> -> vector<8x4xf32>
      %c0_19 = arith.constant 0 : index
      %c0_20 = arith.constant 0 : index
      %29 = vector.load %arg9[%c0_19, %c0_20] : memref<1x4xf32, #tpu.memory_space<vmem>>, vector<1x4xf32>
      %30 = vector.broadcast %29 : vector<1x4xf32> to vector<8x4xf32>
      %31 = arith.addf %28, %30 : vector<8x4xf32>
      %32 = math.tanh %31 : vector<8x4xf32>
      %c0_21 = arith.constant 0 : index
      %c0_22 = arith.constant 0 : index
      %33 = vector.load %arg10[%c0_21, %c0_22] : memref<8x4xf32, #tpu.memory_space<vmem>>, vector<8x4xf32>
      tpu.vector_store %arg10[%c0_21, %c0_22], %32 {strides = array<i32>} : memref<8x4xf32, #tpu.memory_space<vmem>>, vector<8x4xf32>,
    } else {
    }
    return
  }
  func.func @transform_0(%arg0: i32, %arg1: i32, %arg2: memref<1xi32, #tpu.memory_space<smem>>) -> (i32, i32) {
    %c0_i32 = arith.constant 0 : i32
    %c0_i32_0 = arith.constant 0 : i32
    return %arg1, %c0_i32 : i32, i32
  }
  func.func @transform_1(%arg0: i32, %arg1: i32, %arg2: memref<1xi32, #tpu.memory_space<smem>>) -> (i32, i32) {
    %c0_i32 = arith.constant 0 : i32
    %c0_i32_0 = arith.constant 0 : i32
    %c0_i32_1 = arith.constant 0 : i32
    return %c0_i32, %c0_i32_0 : i32, i32
  }
  func.func @transform_2(%arg0: i32, %arg1: i32, %arg2: memref<1xi32, #tpu.memory_space<smem>>) -> (i32, i32) {
    %c0_i32 = arith.constant 0 : i32
    %c0_i32_0 = arith.constant 0 : i32
    %c0_i32_1 = arith.constant 0 : i32
    return %c0_i32, %c0_i32_0 : i32, i32
  }
  func.func @transform_3(%arg0: i32, %arg1: i32, %arg2: memref<1xi32, #tpu.memory_space<smem>>) -> (i32, i32) {
    %c0_i32 = arith.constant 0 : i32
    %c0_i32_0 = arith.constant 0 : i32
    %c0_i32_1 = arith.constant 0 : i32
    return %c0_i32, %c0_i32_0 : i32, i32
  }
  func.func @transform_4(%arg0: i32, %arg1: i32, %arg2: memref<1xi32, #tpu.memory_space<smem>>) -> (i32, i32) {
    %c0_i32 = arith.constant 0 : i32
    %c0_i32_0 = arith.constant 0 : i32
    %c0_i32_1 = arith.constant 0 : i32
    return %c0_i32, %c0_i32_0 : i32, i32
  }
  func.func @transform_5(%arg0: i32, %arg1: i32, %arg2: memref<1xi32, #tpu.memory_space<smem>>) -> (i32, i32) {
    %c0_i32 = arith.constant 0 : i32
    %c0_i32_0 = arith.constant 0 : i32
    %c0_i32_1 = arith.constant 0 : i32
    return %c0_i32, %c0_i32_0 : i32, i32
  }
  func.func @transform_6(%arg0: i32, %arg1: i32, %arg2: memref<1xi32, #tpu.memory_space<smem>>) -> (i32, i32) {
    %c0_i32 = arith.constant 0 : i32
    %c0_i32_0 = arith.constant 0 : i32
    %c0_i32_1 = arith.constant 0 : i32
    return %c0_i32, %c0_i32_0 : i32, i32
  }
  func.func @transform_7(%arg0: i32, %arg1: i32, %arg2: memref<1xi32, #tpu.memory_space<smem>>) -> (i32, i32) {
    %0 = arith.muli %arg0, %arg1 : i32
    %c0_i32 = arith.constant 0 : i32
    %c0_i32_0 = arith.constant 0 : i32
    return %0, %c0_i32 : i32, i32
  }
}

</mosaic_0001>

<llo_original>
// kernel: tpu_custom_call.1
$region0: #{tpu_custom_call.1}
  #allocation0 [shape = 'u32[]', space=smem, size = 0x4, offset = 0x4, fixed_abs, tag = 'smem constant byte address 0x4 - core index']
  #allocation1 [shape = 'u32[144,128]{1,0:T(1,128)}', space=vmem, size = 0x12000, scoped, tag = 'internal scratch']
  #allocation2 [shape = 'f32[1,8,128]{2,1,0:T(8,128)}', space=vmem, size = 0x1000, scoped, tag = 'scratch operand']
  #allocation3 [shape = 'f32[2,32]{1,0:T(2,128)}', space=vmem, size = 0x400, scoped, tag = 'scratch operand']
  #allocation4 [shape = 'f32[1,32]{1,0:T(1,128)}', space=vmem, size = 0x200, scoped, tag = 'scratch operand']
  #allocation5 [shape = 'f32[32,128]{1,0:T(8,128)}', space=vmem, size = 0x4000, scoped, tag = 'scratch operand']
  #allocation6 [shape = 'f32[1,128]{1,0:T(1,128)}', space=vmem, size = 0x200, scoped, tag = 'scratch operand']
  #allocation7 [shape = 's32[1]{0}', space=sflag, size = 0x4, scoped, tag = 'scoped memory for tpu_custom_call.1']
  #allocation8 [shape = 's32[1]{0:T(128)S(6)}', space=smem, size = 0x200, scoped, tag = 'prefetched SMEM operand 0']
  %s0 = inlined_call_operand.<no memory space> [shape: s32[1], index: 0, kind: input, shape index: {}]
  %s1 = inlined_call_operand.vmem [shape: f32[8,32], index: 1, kind: input, shape index: {}]
  %s2 = inlined_call_operand.hbm [shape: f32[32,128], index: 2, kind: input, shape index: {}]
  %s3 = inlined_call_operand.vmem [shape: f32[1,128], index: 3, kind: input, shape index: {}]
  %s4 = inlined_call_operand.vmem [shape: f32[128,128], index: 4, kind: input, shape index: {}]
  %s5 = inlined_call_operand.vmem [shape: f32[1,128], index: 5, kind: input, shape index: {}]
  %s6 = inlined_call_operand.vmem [shape: f32[128,4], index: 6, kind: input, shape index: {}]
  %s7 = inlined_call_operand.vmem [shape: f32[1,4], index: 7, kind: input, shape index: {}]
  %s8 = inlined_call_operand.vmem [shape: f32[8,4], index: 8, kind: output, shape index: {}]
  %s9 = sld [smem:[#allocation0]]
  $region81: #{tpu_custom_call.1} parent=0
    _
  %s11 = ssub.s32 1, %s9
  %s12 = scalar_select 0, %s11, %s9
  %13 = sst [smem:[#allocation8]] %s0
  $region1: #{tpu_custom_call.1} parent=0
    #allocation9 [shape = 'u8[16384]{0}', space=vmem, size = 0x4000, scoped, tag = 'input window, operand 2, single buffered']
    #allocation10 [shape = 's32[2]{0}', space=sflag, size = 0x8, scoped, tag = 'scoped memory for tpu_custom_call.1']
    %14 = vsyncpa [#allocation10], 0
    loop: start=0, step=1, limit=4
    $region2: #{tpu_custom_call.1} parent=1 // loop_pre_header
      _
    $region3: #{tpu_custom_call.1} parent=1 // loop_header
      %s16 = sphi 0, %s20
      %p17 = scmp.ge.s32.totalorder %s16, 4
      %s23 = sphi 0, %s35
      %s24 = sphi 0, %s31
      %s25 = sphi 0, %s23
      %s26 = sphi 0, %s24
      %s27 = sphi 0, %s25
      %s28 = sphi 0, %s26
      %s38 = sphi 0, %s40
      %s41 = sphi 0, %s38
      %s42 = sphi 0, %s41
      %s58 = sphi 0, %s42
      %s62 = sphi 0, %s62
      %s64 = sphi 0, %s62
      %s65 = sphi 0, %s64
      %s79 = sphi 0, %s65
      %s83 = sphi 0, %s83
      %s85 = sphi 0, %s83
      %s86 = sphi 0, %s85
      %s100 = sphi 0, %s86
      %s104 = sphi 0, %s104
      %s106 = sphi 0, %s104
      %s107 = sphi 0, %s106
      %s121 = sphi 0, %s107
      %s125 = sphi 0, %s125
      %s127 = sphi 0, %s125
      %s128 = sphi 0, %s127
      %s142 = sphi 0, %s128
      %s146 = sphi 0, %s146
      %s148 = sphi 0, %s146
      %s149 = sphi 0, %s148
      %s163 = sphi 0, %s149
      %s167 = sphi 0, %s167
      %s169 = sphi 0, %s167
      %s170 = sphi 0, %s169
      %s184 = sphi 0, %s170
      %s192 = sphi 0, %s194
      %s195 = sphi 0, %s192
      %s196 = sphi 0, %s195
      %s212 = sphi 0, %s196
    $region4: #{tpu_custom_call.1} parent=1 // loop_header_branch
      %19 = sbr.rel (%p17) target = $region8
    $region5: #{tpu_custom_call.1} parent=1 // loop_body
      %s21 = ssub.s32 %s16, 1
      %s22 = ssub.s32 %s16, 2
      %s29 = sadd.s32 1, %s24
      %p30 = scmp.ge.s32.totalorder %s29, 1
      %s31 = scalar_select %p30, 0, %s29
      %s32 = sadd.s32 1, %s23
      %s33 = scalar_select %p30, %s32, %s23
      %p34 = scmp.ge.s32.totalorder %s33, 2
      %s35 = scalar_select %p34, 0, %s33
      %s36 = ssub.s32 %s24, %s31
      %p37 = scmp.eq.s32.totalorder %s36, 0
      %s39 = sadd.s32 %s38, 1
      %s40 = scalar_select %p37, %s38, %s39
      %p43 = pneg %p37
      %p44 = scmp.eq.s32.totalorder %s16, 1
      %p45 = por %p43, %p44
      %p46 = scmp.ne.s32.totalorder %s38, %s41
      %p47 = scmp.eq.s32.totalorder %s16, 0
      %p48 = por %p46, %p47
      %p49 = scmp.ne.s32.totalorder %s38, %s41
      %p50 = scmp.eq.s32.totalorder %s21, 1
      %p51 = por %p49, %p50
      %p52 = scmp.ne.s32.totalorder %s41, %s42
      %p53 = scmp.eq.s32.totalorder %s21, 0
      %p54 = por %p52, %p53
      %p55 = scmp.ne.s32.totalorder %s41, %s42
      %p56 = scmp.eq.s32.totalorder %s22, 1
      %p57 = por %p55, %p56
      %p59 = scmp.ne.s32.totalorder %s42, %s58
      %p60 = scmp.eq.s32.totalorder %s22, 0
      %p61 = por %p59, %p60
      %s63 = sadd.s32 %s62, 1
      %p66 = scmp.eq.s32.totalorder %s16, 1
      %p67 = scmp.ne.s32.totalorder %s62, %s64
      %p68 = scmp.eq.s32.totalorder %s16, 0
      %p69 = por %p67, %p68
      %p70 = scmp.ne.s32.totalorder %s62, %s64
      %p71 = scmp.eq.s32.totalorder %s21, 1
      %p72 = por %p70, %p71
      %p73 = scmp.ne.s32.totalorder %s64, %s65
      %p74 = scmp.eq.s32.totalorder %s21, 0
      %p75 = por %p73, %p74
      %p76 = scmp.ne.s32.totalorder %s64, %s65
      %p77 = scmp.eq.s32.totalorder %s22, 1
      %p78 = por %p76, %p77
      %p80 = scmp.ne.s32.totalorder %s65, %s79
      %p81 = scmp.eq.s32.totalorder %s22, 0
      %p82 = por %p80, %p81
      %s84 = sadd.s32 %s83, 1
      %p87 = scmp.eq.s32.totalorder %s16, 1
      %p88 = scmp.ne.s32.totalorder %s83, %s85
      %p89 = scmp.eq.s32.totalorder %s16, 0
      %p90 = por %p88, %p89
      %p91 = scmp.ne.s32.totalorder %s83, %s85
      %p92 = scmp.eq.s32.totalorder %s21, 1
      %p93 = por %p91, %p92
      %p94 = scmp.ne.s32.totalorder %s85, %s86
      %p95 = scmp.eq.s32.totalorder %s21, 0
      %p96 = por %p94, %p95
      %p97 = scmp.ne.s32.totalorder %s85, %s86
      %p98 = scmp.eq.s32.totalorder %s22, 1
      %p99 = por %p97, %p98
      %p101 = scmp.ne.s32.totalorder %s86, %s100
      %p102 = scmp.eq.s32.totalorder %s22, 0
      %p103 = por %p101, %p102
      %s105 = sadd.s32 %s104, 1
      %p108 = scmp.eq.s32.totalorder %s16, 1
      %p109 = scmp.ne.s32.totalorder %s104, %s106
      %p110 = scmp.eq.s32.totalorder %s16, 0
      %p111 = por %p109, %p110
      %p112 = scmp.ne.s32.totalorder %s104, %s106
      %p113 = scmp.eq.s32.totalorder %s21, 1
      %p114 = por %p112, %p113
      %p115 = scmp.ne.s32.totalorder %s106, %s107
      %p116 = scmp.eq.s32.totalorder %s21, 0
      %p117 = por %p115, %p116
      %p118 = scmp.ne.s32.totalorder %s106, %s107
      %p119 = scmp.eq.s32.totalorder %s22, 1
      %p120 = por %p118, %p119
      %p122 = scmp.ne.s32.totalorder %s107, %s121
      %p123 = scmp.eq.s32.totalorder %s22, 0
      %p124 = por %p122, %p123
      %s126 = sadd.s32 %s125, 1
      %p129 = scmp.eq.s32.totalorder %s16, 1
      %p130 = scmp.ne.s32.totalorder %s125, %s127
      %p131 = scmp.eq.s32.totalorder %s16, 0
      %p132 = por %p130, %p131
      %p133 = scmp.ne.s32.totalorder %s125, %s127
      %p134 = scmp.eq.s32.totalorder %s21, 1
      %p135 = por %p133, %p134
      %p136 = scmp.ne.s32.totalorder %s127, %s128
      %p137 = scmp.eq.s32.totalorder %s21, 0
      %p138 = por %p136, %p137
      %p139 = scmp.ne.s32.totalorder %s127, %s128
      %p140 = scmp.eq.s32.totalorder %s22, 1
      %p141 = por %p139, %p140
      %p143 = scmp.ne.s32.totalorder %s128, %s142
      %p144 = scmp.eq.s32.totalorder %s22, 0
      %p145 = por %p143, %p144
      %s147 = sadd.s32 %s146, 1
      %p150 = scmp.eq.s32.totalorder %s16, 1
      %p151 = scmp.ne.s32.totalorder %s146, %s148
      %p152 = scmp.eq.s32.totalorder %s16, 0
      %p153 = por %p151, %p152
      %p154 = scmp.ne.s32.totalorder %s146, %s148
      %p155 = scmp.eq.s32.totalorder %s21, 1
      %p156 = por %p154, %p155
      %p157 = scmp.ne.s32.totalorder %s148, %s149
      %p158 = scmp.eq.s32.totalorder %s21, 0
      %p159 = por %p157, %p158
      %p160 = scmp.ne.s32.totalorder %s148, %s149
      %p161 = scmp.eq.s32.totalorder %s22, 1
      %p162 = por %p160, %p161
      %p164 = scmp.ne.s32.totalorder %s149, %s163
      %p165 = scmp.eq.s32.totalorder %s22, 0
      %p166 = por %p164, %p165
      %s168 = sadd.s32 %s167, 1
      %p171 = scmp.eq.s32.totalorder %s16, 1
      %p172 = scmp.ne.s32.totalorder %s167, %s169
      %p173 = scmp.eq.s32.totalorder %s16, 0
      %p174 = por %p172, %p173
      %p175 = scmp.ne.s32.totalorder %s167, %s169
      %p176 = scmp.eq.s32.totalorder %s21, 1
      %p177 = por %p175, %p176
      %p178 = scmp.ne.s32.totalorder %s169, %s170
      %p179 = scmp.eq.s32.totalorder %s21, 0
      %p180 = por %p178, %p179
      %p181 = scmp.ne.s32.totalorder %s169, %s170
      %p182 = scmp.eq.s32.totalorder %s22, 1
      %p183 = por %p181, %p182
      %p185 = scmp.ne.s32.totalorder %s170, %s184
      %p186 = scmp.eq.s32.totalorder %s22, 0
      %p187 = por %p185, %p186
      %s188 = smul.u32 %s23, %s24
      %s189 = smul.u32 %s35, %s31
      %s190 = ssub.s32 %s188, %s189
      %p191 = scmp.eq.s32.totalorder %s190, 0
      %s193 = sadd.s32 %s192, 1
      %s194 = scalar_select %p191, %s192, %s193
      %p197 = pneg %p191
      %p198 = scmp.eq.s32.totalorder %s16, 1
      %p199 = por %p197, %p198
      %p200 = scmp.ne.s32.totalorder %s192, %s195
      %p201 = scmp.eq.s32.totalorder %s16, 0
      %p202 = por %p200, %p201
      %p203 = scmp.ne.s32.totalorder %s192, %s195
      %p204 = scmp.eq.s32.totalorder %s21, 1
      %p205 = por %p203, %p204
      %p206 = scmp.ne.s32.totalorder %s195, %s196
      %p207 = scmp.eq.s32.totalorder %s21, 0
      %p208 = por %p206, %p207
      %p209 = scmp.ne.s32.totalorder %s195, %s196
      %p210 = scmp.eq.s32.totalorder %s22, 1
      %p211 = por %p209, %p210
      %p213 = scmp.ne.s32.totalorder %s196, %s212
      %p214 = scmp.eq.s32.totalorder %s22, 0
      %p215 = por %p213, %p214
      %p216 = scmp.le.s32.totalorder 1, %s16
      %p217 = scmp.lt.s32.totalorder %s16, 3
      %p218 = pnand %p216, %p217
      %p219 = pneg %p218
      // Predicated region
      $region9: #{tpu_custom_call.1} parent=5 // pred_check
        _
      $region10: #{tpu_custom_call.1} parent=5 // pred_check_branch
        %221 = sbr.rel (%p218) target = $region12
      $region11: #{tpu_custom_call.1} parent=5 // pred_region
        %s222 = ssub.s32 %s16, 1
        // Predicated region
        $region13: #{tpu_custom_call.1} parent=11 // pred_check
          %p223 = pneg %p54
        $region14: #{tpu_custom_call.1} parent=11 // pred_check_branch
          %225 = sbr.rel (%p223) target = $region16
        $region15: #{tpu_custom_call.1} parent=11 // pred_region
          %p226 = scmp.lt.s32.totalorder %s26, 0
          %s227 = scalar_select %p226, %s26, 0
          %s228 = smul.addr %s227, 8
          %s229 = scalar_lea.vmem %s1, %s228
        $region16: #{tpu_custom_call.1} parent=11 // pred_fallthru
          _
        // Predicated region
        $region17: #{tpu_custom_call.1} parent=11 // pred_check
          %p230 = pneg %p75
        $region18: #{tpu_custom_call.1} parent=11 // pred_check_branch
          %232 = sbr.rel (%p230) target = $region20
        $region19: #{tpu_custom_call.1} parent=11 // pred_region
          %s234 = ssub.s32 512, 512
          %235 = vsyncadd [#allocation10], %s234
          %s236 = sshll.u32 [#allocation9], 4
          %s237 = int_to_ptr.vmem [resolvable:$true] %s236
          %242 = dma.hbm_to_vmem [thread:$0]  %s2, 512, %s237, [#allocation10], 128, 128, 8
        $region20: #{tpu_custom_call.1} parent=11 // pred_fallthru
          _
        // Predicated region
        $region21: #{tpu_custom_call.1} parent=11 // pred_check
          %p243 = pneg %p96
        $region22: #{tpu_custom_call.1} parent=11 // pred_check_branch
          %245 = sbr.rel (%p243) target = $region24
        $region23: #{tpu_custom_call.1} parent=11 // pred_region
          _
        $region24: #{tpu_custom_call.1} parent=11 // pred_fallthru
          _
        // Predicated region
        $region25: #{tpu_custom_call.1} parent=11 // pred_check
          %p246 = pneg %p117
        $region26: #{tpu_custom_call.1} parent=11 // pred_check_branch
          %248 = sbr.rel (%p246) target = $region28
        $region27: #{tpu_custom_call.1} parent=11 // pred_region
          _
        $region28: #{tpu_custom_call.1} parent=11 // pred_fallthru
          _
        // Predicated region
        $region29: #{tpu_custom_call.1} parent=11 // pred_check
          %p249 = pneg %p138
        $region30: #{tpu_custom_call.1} parent=11 // pred_check_branch
          %251 = sbr.rel (%p249) target = $region32
        $region31: #{tpu_custom_call.1} parent=11 // pred_region
          _
        $region32: #{tpu_custom_call.1} parent=11 // pred_fallthru
          _
        // Predicated region
        $region33: #{tpu_custom_call.1} parent=11 // pred_check
          %p252 = pneg %p159
        $region34: #{tpu_custom_call.1} parent=11 // pred_check_branch
          %254 = sbr.rel (%p252) target = $region36
        $region35: #{tpu_custom_call.1} parent=11 // pred_region
          _
        $region36: #{tpu_custom_call.1} parent=11 // pred_fallthru
          _
        // Predicated region
        $region37: #{tpu_custom_call.1} parent=11 // pred_check
          %p255 = pneg %p180
        $region38: #{tpu_custom_call.1} parent=11 // pred_check_branch
          %257 = sbr.rel (%p255) target = $region40
        $region39: #{tpu_custom_call.1} parent=11 // pred_region
          _
        $region40: #{tpu_custom_call.1} parent=11 // pred_fallthru
          _
      $region12: #{tpu_custom_call.1} parent=5 // pred_fallthru
        _
      %p258 = scmp.lt.s32.totalorder %s16, 2
      // Predicated region
      $region41: #{tpu_custom_call.1} parent=5 // pred_check
        %p259 = pneg %p258
      $region42: #{tpu_custom_call.1} parent=5 // pred_check_branch
        %261 = sbr.rel (%p259) target = $region44
      $region43: #{tpu_custom_call.1} parent=5 // pred_region
        _
      $region44: #{tpu_custom_call.1} parent=5 // pred_fallthru
        _
      %p262 = scmp.le.s32.totalorder 1, %s16
      %p263 = scmp.lt.s32.totalorder %s16, 3
      %p264 = pnand %p262, %p263
      %p265 = pneg %p264
      // Predicated region
      $region45: #{tpu_custom_call.1} parent=5 // pred_check
        _
      $region46: #{tpu_custom_call.1} parent=5 // pred_check_branch
        %267 = sbr.rel (%p264) target = $region48
      $region47: #{tpu_custom_call.1} parent=5 // pred_region
        %s268 = ssub.s32 %s16, 1
        // Predicated region
        $region49: #{tpu_custom_call.1} parent=47 // pred_check
          %p269 = pneg %p75
        $region50: #{tpu_custom_call.1} parent=47 // pred_check_branch
          %271 = sbr.rel (%p269) target = $region52
        $region51: #{tpu_custom_call.1} parent=47 // pred_region
          %272 = dma.done [#allocation10], 512
        $region52: #{tpu_custom_call.1} parent=47 // pred_fallthru
          _
        %p273 = scmp.lt.s32.totalorder %s26, 0
        %s274 = scalar_select %p273, %s26, 0
        %s275 = smul.addr %s274, 8
        %s276 = scalar_lea.vmem %s1, %s275
        %p277 = pneg %p54
        %p278 = pneg %p51
        %p279 = pneg %p75
        %p280 = pneg %p72
        %p281 = pneg %p96
        %p282 = pneg %p93
        %p283 = pneg %p117
        %p284 = pneg %p114
        %p285 = pneg %p138
        %p286 = pneg %p135
        %p287 = pneg %p159
        %p288 = pneg %p156
        %p289 = pneg %p180
        %p290 = pneg %p177
        %p291 = pneg %p208
        %p292 = pneg %p205
        %s293 = smul.u32 %s25, %s26
        %p294 = scmp.lt.s32.totalorder %s293, 0
        %s295 = scalar_select %p294, %s293, 0
        %s296 = smul.addr %s295, 8
        %s297 = scalar_lea.vmem %s8, %s296
        %p298 = scmp.lt.s32.totalorder %s26, 0
        %s299 = scalar_select %p298, %s26, 0
        %s300 = smul.addr %s299, 8
        %s301 = scalar_lea.vmem %s1, %s300
        %s302 = smul.u32 %s25, %s26
        %p303 = scmp.lt.s32.totalorder %s302, 0
        %s304 = scalar_select %p303, %s302, 0
        %s305 = smul.addr %s304, 8
        %s306 = scalar_lea.vmem %s8, %s305
        %s307 = smul.u32 %s25, %s26
        %p308 = scmp.eq.s32.totalorder %s25, 0
        // Predicated region
        $region53: #{tpu_custom_call.1} parent=47 // pred_check
          %p309 = pneg %p308
        $region54: #{tpu_custom_call.1} parent=47 // pred_check_branch
          %311 = sbr.rel (%p309) target = $region56
        $region55: #{tpu_custom_call.1} parent=47 // pred_region
          %v312 = vld [vmem:[%s301] sm:$0xff]
          %p313 = scmp.eq.s32.totalorder %s26, 0
          // Predicated region
          $region57: #{tpu_custom_call.1} parent=55 // pred_check
            %p314 = pneg %p313
          $region58: #{tpu_custom_call.1} parent=55 // pred_check_branch
            %316 = sbr.rel (%p314) target = $region60
          $region59: #{tpu_custom_call.1} parent=55 // pred_region
            %vm317 = vcmask 254976
            %318 = vst.msk [vmem:[#allocation3] sm:$0x3] %vm317, 0.0
            %vm319 = vcmask 253952
            %320 = vst.msk [vmem:[#allocation4] sm:$0x1] %vm319, %v312
          $region60: #{tpu_custom_call.1} parent=55 // pred_fallthru
            _
          %s321 = sld [smem:[#allocation8]]
          %v322 = vld [vmem:[#allocation4] sm:$0x1]
          %s323 = smul.u32 %s26, 8
          %v324 = vlaneseq
          %v325 = vshrl.u32 %v324, 7
          %v326 = vstv %s323
          %v327 = vadd.s32 %v326, %v325
          %v328 = vstv %s321
          %vm329 = vcmp.lt.s32.totalorder %v327, %v328
          %v331 = vlaneseq
          %v332 = vshrl.u32 %v331, 7
          %v333 = vsub.s32 0, %v332
          %v334 = vrot.slane %v322, %v333
          %v336 = vsub.f32 %v312, %v334
          %v337 = vsel %vm329, %v336, 0.0
          %vm338 = vcmask 261120
          %v339 = vsel %vm338, %v337, 0.0
          %v340 = vrot.slane %v339, 4
          %v341 = vadd.f32 %v339, %v340
          %v342 = vrot.slane %v341, 2
          %v343 = vadd.f32 %v341, %v342
          %v344 = vrot.slane %v343, 1
          %v345 = vadd.f32 %v343, %v344
          %v346 = vmul.f32 %v337, %v337
          %v347 = vsel %vm338, %v346, 0.0
          %v348 = vrot.slane %v347, 4
          %v349 = vadd.f32 %v347, %v348
          %v350 = vrot.slane %v349, 2
          %v351 = vadd.f32 %v349, %v350
          %v352 = vrot.slane %v351, 1
          %v353 = vadd.f32 %v351, %v352
          %vm354 = vcmask 1040384
          %v355 = vsel %vm354, %v345, %v353
          %v356 = vld [vmem:[#allocation3] sm:$0x3]
          %v357 = vadd.f32 %v356, %v355
          %vm358 = vcmask 254976
          %359 = vst.msk [vmem:[#allocation3] sm:$0x3] %vm358, %v357
          // Predicated region
          $region61: #{tpu_custom_call.1} parent=55 // pred_check
            %p360 = pneg %p313
          $region62: #{tpu_custom_call.1} parent=55 // pred_check_branch
            %362 = sbr.rel (%p360) target = $region64
          $region63: #{tpu_custom_call.1} parent=55 // pred_region
            %s363 = scvt.s32.f32 %s321
            %v364 = vld [vmem:[#allocation3] sm:$0x3]
            %v365 = vstv %s363
            %v366 = vrcp.pop %v365
            %v367 = vmul.f32 %v364, %v366
            %v368 = vld [vmem:[#allocation4] sm:$0x1]
            %v369 = vadd.f32 %v368, %v367
            %v370 = vmul.f32 %v367, %v367
            %v372 = vrot.slane %v370, 7
            %v374 = vsub.f32 %v367, %v372
            %v375 = vadd.f32 %v374, 1e-05
            %v376 = vrsqrt.pop %v375
            %v377 = vadd.s32 %v325, 8
            %v378 = vadd.s32 %v325, 16
            %v379 = vadd.s32 %v325, 24
            %v380 = vlaneseq
            %v381 = vand.u32 %v380, 127
            %vm382 = vcmp.eq.s32.totalorder %v325, %v381
            %vm383 = vcmp.eq.s32.totalorder %v377, %v381
            %vm384 = vcmp.eq.s32.totalorder %v378, %v381
            %vm385 = vcmp.eq.s32.totalorder %v379, %v381
            %v386 = vlaneseq
            %v387 = vshrl.u32 %v386, 7
            %v388 = vsub.s32 1, %v387
            %v389 = vrot.slane %v376, %v388
            %v390 = vsel %vm382, %v389, 0.0
            %v391 = vsel %vm383, %v389, 0.0
            %v392 = vsel %vm384, %v389, 0.0
            %v393 = vsel %vm385, %v389, 0.0
            %v394 = vld [vmem:[#allocation9] sm:$0xff]
            %v395 = vld [vmem:[#allocation9 + $0x8] sm:$0xff]
            %v396 = vld [vmem:[#allocation9 + $0x10] sm:$0xff]
            %v397 = vld [vmem:[#allocation9 + $0x18] sm:$0xff]
            %v399 = vsel %vm338, %v390, 0
            %v402 = vsel %vm338, %v391, 0
            %v405 = vsel %vm338, %v392, 0
            %v408 = vsel %vm338, %v393, 0
            %410 = vmatprep.subr.mxu0 0.0
            %411 = vmatpush1.msra.mxu0 %v394
            %412 = vmatprep.subr.mxu0 0.0
            %413 = vmatpush1.msra.mxu0 %v395
            %414 = vmatprep.subr.mxu0 0.0
            %415 = vmatpush1.msra.mxu0 %v396
            %416 = vmatprep.subr.mxu0 0.0
            %417 = vmatpush1.msra.mxu0 %v397
            %418 = vmatprep.subr.mxu0 0.0
            %419 = vmatpush1.msra.mxu0 0.0
            %420 = vmatprep.subr.mxu0 0.0
            %421 = vmatpush1.msra.mxu0 0.0
            %422 = vmatprep.subr.mxu0 0.0
            %423 = vmatpush1.msra.mxu0 0.0
            %424 = vmatprep.subr.mxu0 0.0
            %425 = vmatpush1.msra.mxu0 0.0
            %426 = vmatprep.subr.mxu0 0.0
            %427 = vmatpush1.msra.mxu0 0.0
            %428 = vmatprep.subr.mxu0 0.0
            %429 = vmatpush1.msra.mxu0 0.0
            %430 = vmatprep.subr.mxu0 0.0
            %431 = vmatpush1.msra.mxu0 0.0
            %432 = vmatprep.subr.mxu0 0.0
            %433 = vmatpush1.msra.mxu0 0.0
            %434 = vmatprep.subr.mxu0 0.0
            %435 = vmatpush1.msra.mxu0 0.0
            %436 = vmatprep.subr.mxu0 0.0
            %437 = vmatpush1.msra.mxu0 0.0
            %438 = vmatprep.subr.mxu0 0.0
            %439 = vmatpush1.msra.mxu0 0.0
            %440 = vmatprep.subr.mxu0 0.0
            %441 = vmatpush1.msra.mxu0 0.0
            %442 = vmatprep.subr.mxu0 0.0
            %443 = vmatpush1.msra.mxu0 0.0
            %444 = vmatprep.subr.mxu0 0.0
            %445 = vmatpush1.msra.mxu0 0.0
            %446 = vmatprep.subr.mxu0 0.0
            %447 = vmatpush1.msra.mxu0 0.0
            %448 = vmatprep.subr.mxu0 0.0
            %449 = vmatpush1.msra.mxu0 0.0
            %450 = vmatprep.subr.mxu0 0.0
            %451 = vmatpush1.msra.mxu0 0.0
            %452 = vmatprep.subr.mxu0 0.0
            %453 = vmatpush1.msra.mxu0 0.0
            %454 = vmatprep.subr.mxu0 0.0
            %455 = vmatpush1.msra.mxu0 0.0
            %456 = vmatprep.subr.mxu0 0.0
            %457 = vmatpush1.msra.mxu0 0.0
            %458 = vmatprep.subr.mxu0 0.0
            %459 = vmatpush1.msra.mxu0 0.0
            %460 = vmatprep.subr.mxu0 0.0
            %461 = vmatpush1.msra.mxu0 0.0
            %462 = vmatprep.subr.mxu0 0.0
            %463 = vmatpush1.msra.mxu0 0.0
            %464 = vmatprep.subr.mxu0 0.0
            %465 = vmatpush1.msra.mxu0 0.0
            %466 = vmatprep.subr.mxu0 0.0
            %467 = vmatpush1.msra.mxu0 0.0
            %468 = vmatprep.subr.mxu0 0.0
            %469 = vmatpush1.msra.mxu0 0.0
            %470 = vmatprep.subr.mxu0 0.0
            %471 = vmatpush1.msra.mxu0 0.0
            %472 = vmatprep.subr.mxu0 0.0
            %473 = vmatpush1.msra.mxu0 0.0
            %474 = vmatprep.mubr.f32.mxu0 0.0
            %475 = vmatmul.mubr.f32.gmra.mrb[0].mxu0 %v399
            %v476 = vpop.f32.mrb[0].mxu0
            %v477 = vadd.f32 0.0, %v476
            %v478 = vpop.f32.mrb[0].mxu0
            %479 = vmatprep.mubr.f32.mxu0 0.0
            %480 = vmatmul.mubr.f32.gmra.mrb[0].mxu0 %v402
            %v481 = vpop.f32.mrb[0].mxu0
            %v482 = vadd.f32 0.0, %v481
            %v483 = vpop.f32.mrb[0].mxu0
            %484 = vmatprep.mubr.f32.mxu0 0.0
            %485 = vmatmul.mubr.f32.gmra.mrb[0].mxu0 %v405
            %v486 = vpop.f32.mrb[0].mxu0
            %v487 = vadd.f32 0.0, %v486
            %v488 = vpop.f32.mrb[0].mxu0
            %489 = vmatprep.mubr.f32.mxu0 0.0
            %490 = vmatmul.mubr.f32.gmra.mrb[0].mxu0 %v408
            %v491 = vpop.f32.mrb[0].mxu0
            %v492 = vadd.f32 0.0, %v491
            %v493 = vpop.f32.mrb[0].mxu0
            %494 = vdwg.mxu0
            %495 = vst [vmem:[#allocation5] sm:$0xff] %v477
            %496 = vst [vmem:[#allocation5 + $0x8] sm:$0xff] %v482
            %497 = vst [vmem:[#allocation5 + $0x10] sm:$0xff] %v487
            %498 = vst [vmem:[#allocation5 + $0x18] sm:$0xff] %v492
            %v499 = vld [vmem:[%s3] sm:$0x1]
            %v501 = vsel %vm338, %v369, 0
            %503 = vmatprep.subr.mxu0 0.0
            %504 = vmatpush1.msra.mxu0 %v477
            %505 = vmatprep.subr.mxu0 0.0
            %506 = vmatpush1.msra.mxu0 %v482
            %507 = vmatprep.subr.mxu0 0.0
            %508 = vmatpush1.msra.mxu0 %v487
            %509 = vmatprep.subr.mxu0 0.0
            %510 = vmatpush1.msra.mxu0 %v492
            %511 = vmatprep.subr.mxu0 0.0
            %512 = vmatpush1.msra.mxu0 0.0
            %513 = vmatprep.subr.mxu0 0.0
            %514 = vmatpush1.msra.mxu0 0.0
            %515 = vmatprep.subr.mxu0 0.0
            %516 = vmatpush1.msra.mxu0 0.0
            %517 = vmatprep.subr.mxu0 0.0
            %518 = vmatpush1.msra.mxu0 0.0
            %519 = vmatprep.subr.mxu0 0.0
            %520 = vmatpush1.msra.mxu0 0.0
            %521 = vmatprep.subr.mxu0 0.0
            %522 = vmatpush1.msra.mxu0 0.0
            %523 = vmatprep.subr.mxu0 0.0
            %524 = vmatpush1.msra.mxu0 0.0
            %525 = vmatprep.subr.mxu0 0.0
            %526 = vmatpush1.msra.mxu0 0.0
            %527 = vmatprep.subr.mxu0 0.0
            %528 = vmatpush1.msra.mxu0 0.0
            %529 = vmatprep.subr.mxu0 0.0
            %530 = vmatpush1.msra.mxu0 0.0
            %531 = vmatprep.subr.mxu0 0.0
            %532 = vmatpush1.msra.mxu0 0.0
            %533 = vmatprep.subr.mxu0 0.0
            %534 = vmatpush1.msra.mxu0 0.0
            %535 = vmatprep.subr.mxu0 0.0
            %536 = vmatpush1.msra.mxu0 0.0
            %537 = vmatprep.subr.mxu0 0.0
            %538 = vmatpush1.msra.mxu0 0.0
            %539 = vmatprep.subr.mxu0 0.0
            %540 = vmatpush1.msra.mxu0 0.0
            %541 = vmatprep.subr.mxu0 0.0
            %542 = vmatpush1.msra.mxu0 0.0
            %543 = vmatprep.subr.mxu0 0.0
            %544 = vmatpush1.msra.mxu0 0.0
            %545 = vmatprep.subr.mxu0 0.0
            %546 = vmatpush1.msra.mxu0 0.0
            %547 = vmatprep.subr.mxu0 0.0
            %548 = vmatpush1.msra.mxu0 0.0
            %549 = vmatprep.subr.mxu0 0.0
            %550 = vmatpush1.msra.mxu0 0.0
            %551 = vmatprep.subr.mxu0 0.0
            %552 = vmatpush1.msra.mxu0 0.0
            %553 = vmatprep.subr.mxu0 0.0
            %554 = vmatpush1.msra.mxu0 0.0
            %555 = vmatprep.subr.mxu0 0.0
            %556 = vmatpush1.msra.mxu0 0.0
            %557 = vmatprep.subr.mxu0 0.0
            %558 = vmatpush1.msra.mxu0 0.0
            %559 = vmatprep.subr.mxu0 0.0
            %560 = vmatpush1.msra.mxu0 0.0
            %561 = vmatprep.subr.mxu0 0.0
            %562 = vmatpush1.msra.mxu0 0.0
            %563 = vmatprep.subr.mxu0 0.0
            %564 = vmatpush1.msra.mxu0 0.0
            %565 = vmatprep.subr.mxu0 0.0
            %566 = vmatpush1.msra.mxu0 0.0
            %567 = vmatprep.mubr.f32.mxu0 0.0
            %568 = vmatmul.mubr.f32.gmra.mrb[0].mxu0 %v501
            %v569 = vpop.f32.mrb[0].mxu0
            %v570 = vadd.f32 0.0, %v569
            %v571 = vpop.f32.mrb[0].mxu0
            %572 = vdwg.mxu0
            %v573 = vsub.f32 %v499, %v570
            %574 = vst [vmem:[#allocation6] sm:$0x1] %v573
          $region64: #{tpu_custom_call.1} parent=55 // pred_fallthru
            _
        $region56: #{tpu_custom_call.1} parent=47 // pred_fallthru
          _
        %p575 = scmp.eq.s32.totalorder %s25, 1
        // Predicated region
        $region65: #{tpu_custom_call.1} parent=47 // pred_check
          %p576 = pneg %p575
        $region66: #{tpu_custom_call.1} parent=47 // pred_check_branch
          %578 = sbr.rel (%p576) target = $region68
        $region67: #{tpu_custom_call.1} parent=47 // pred_region
          %v579 = vld [vmem:[%s301] sm:$0xff]
          %v580 = vld [vmem:[#allocation5] sm:$0xff]
          %v581 = vld [vmem:[#allocation5 + $0x8] sm:$0xff]
          %v582 = vld [vmem:[#allocation5 + $0x10] sm:$0xff]
          %v583 = vld [vmem:[#allocation5 + $0x18] sm:$0xff]
          %v584 = vld [vmem:[#allocation6] sm:$0x1]
          %v586 = vlaneseq
          %v587 = vshrl.u32 %v586, 7
          %v588 = vsub.s32 0, %v587
          %v589 = vrot.slane %v584, %v588
          %vm591 = vcmask 261120
          %v593 = vsel %vm591, %v579, 0
          %595 = vmatprep.subr.mxu0 0.0
          %596 = vmatpush1.msra.mxu0 %v580
          %597 = vmatprep.subr.mxu0 0.0
          %598 = vmatpush1.msra.mxu0 %v581
          %599 = vmatprep.subr.mxu0 0.0
          %600 = vmatpush1.msra.mxu0 %v582
          %601 = vmatprep.subr.mxu0 0.0
          %602 = vmatpush1.msra.mxu0 %v583
          %603 = vmatprep.subr.mxu0 0.0
          %604 = vmatpush1.msra.mxu0 0.0
          %605 = vmatprep.subr.mxu0 0.0
          %606 = vmatpush1.msra.mxu0 0.0
          %607 = vmatprep.subr.mxu0 0.0
          %608 = vmatpush1.msra.mxu0 0.0
          %609 = vmatprep.subr.mxu0 0.0
          %610 = vmatpush1.msra.mxu0 0.0
          %611 = vmatprep.subr.mxu0 0.0
          %612 = vmatpush1.msra.mxu0 0.0
          %613 = vmatprep.subr.mxu0 0.0
          %614 = vmatpush1.msra.mxu0 0.0
          %615 = vmatprep.subr.mxu0 0.0
          %616 = vmatpush1.msra.mxu0 0.0
          %617 = vmatprep.subr.mxu0 0.0
          %618 = vmatpush1.msra.mxu0 0.0
          %619 = vmatprep.subr.mxu0 0.0
          %620 = vmatpush1.msra.mxu0 0.0
          %621 = vmatprep.subr.mxu0 0.0
          %622 = vmatpush1.msra.mxu0 0.0
          %623 = vmatprep.subr.mxu0 0.0
          %624 = vmatpush1.msra.mxu0 0.0
          %625 = vmatprep.subr.mxu0 0.0
          %626 = vmatpush1.msra.mxu0 0.0
          %627 = vmatprep.subr.mxu0 0.0
          %628 = vmatpush1.msra.mxu0 0.0
          %629 = vmatprep.subr.mxu0 0.0
          %630 = vmatpush1.msra.mxu0 0.0
          %631 = vmatprep.subr.mxu0 0.0
          %632 = vmatpush1.msra.mxu0 0.0
          %633 = vmatprep.subr.mxu0 0.0
          %634 = vmatpush1.msra.mxu0 0.0
          %635 = vmatprep.subr.mxu0 0.0
          %636 = vmatpush1.msra.mxu0 0.0
          %637 = vmatprep.subr.mxu0 0.0
          %638 = vmatpush1.msra.mxu0 0.0
          %639 = vmatprep.subr.mxu0 0.0
          %640 = vmatpush1.msra.mxu0 0.0
          %641 = vmatprep.subr.mxu0 0.0
          %642 = vmatpush1.msra.mxu0 0.0
          %643 = vmatprep.subr.mxu0 0.0
          %644 = vmatpush1.msra.mxu0 0.0
          %645 = vmatprep.subr.mxu0 0.0
          %646 = vmatpush1.msra.mxu0 0.0
          %647 = vmatprep.subr.mxu0 0.0
          %648 = vmatpush1.msra.mxu0 0.0
          %649 = vmatprep.subr.mxu0 0.0
          %650 = vmatpush1.msra.mxu0 0.0
          %651 = vmatprep.subr.mxu0 0.0
          %652 = vmatpush1.msra.mxu0 0.0
          %653 = vmatprep.subr.mxu0 0.0
          %654 = vmatpush1.msra.mxu0 0.0
          %655 = vmatprep.subr.mxu0 0.0
          %656 = vmatpush1.msra.mxu0 0.0
          %657 = vmatprep.subr.mxu0 0.0
          %658 = vmatpush1.msra.mxu0 0.0
          %659 = vmatprep.mubr.f32.mxu0 0.0
          %660 = vmatmul.mubr.f32.gmra.mrb[0].mxu0 %v593
          %v661 = vpop.f32.mrb[0].mxu0
          %v662 = vadd.f32 %v589, %v661
          %v663 = vpop.f32.mrb[0].mxu0
          %664 = vdwg.mxu0
          %vm665 = vcmp.gt.f32.partialorder %v662, 0.0
          %v666 = vmul.f32 %v662, 0.01
          %v667 = vsel %vm665, %v662, %v666
          %v668 = vld [vmem:[%s4] sm:$0xff]
          %v669 = vld [vmem:[%s4 + $0x8] sm:$0xff]
          %v670 = vld [vmem:[%s4 + $0x10] sm:$0xff]
          %v671 = vld [vmem:[%s4 + $0x18] sm:$0xff]
          %v672 = vld [vmem:[%s4 + $0x20] sm:$0xff]
          %v673 = vld [vmem:[%s4 + $0x28] sm:$0xff]
          %v674 = vld [vmem:[%s4 + $0x30] sm:$0xff]
          %v675 = vld [vmem:[%s4 + $0x38] sm:$0xff]
          %v676 = vld [vmem:[%s4 + $0x40] sm:$0xff]
          %v677 = vld [vmem:[%s4 + $0x48] sm:$0xff]
          %v678 = vld [vmem:[%s4 + $0x50] sm:$0xff]
          %v679 = vld [vmem:[%s4 + $0x58] sm:$0xff]
          %v680 = vld [vmem:[%s4 + $0x60] sm:$0xff]
          %v681 = vld [vmem:[%s4 + $0x68] sm:$0xff]
          %v682 = vld [vmem:[%s4 + $0x70] sm:$0xff]
          %v683 = vld [vmem:[%s4 + $0x78] sm:$0xff]
          %v684 = vld [vmem:[%s5] sm:$0x1]
          %v686 = vlaneseq
          %v687 = vshrl.u32 %v686, 7
          %v688 = vsub.s32 0, %v687
          %v689 = vrot.slane %v684, %v688
          %691 = vmatprep.subr.mxu0 0.0
          %692 = vmatpush1.msra.mxu0 %v668
          %693 = vmatprep.subr.mxu0 0.0
          %694 = vmatpush1.msra.mxu0 %v669
          %695 = vmatprep.subr.mxu0 0.0
          %696 = vmatpush1.msra.mxu0 %v670
          %697 = vmatprep.subr.mxu0 0.0
          %698 = vmatpush1.msra.mxu0 %v671
          %699 = vmatprep.subr.mxu0 0.0
          %700 = vmatpush1.msra.mxu0 %v672
          %701 = vmatprep.subr.mxu0 0.0
          %702 = vmatpush1.msra.mxu0 %v673
          %703 = vmatprep.subr.mxu0 0.0
          %704 = vmatpush1.msra.mxu0 %v674
          %705 = vmatprep.subr.mxu0 0.0
          %706 = vmatpush1.msra.mxu0 %v675
          %707 = vmatprep.subr.mxu0 0.0
          %708 = vmatpush1.msra.mxu0 %v676
          %709 = vmatprep.subr.mxu0 0.0
          %710 = vmatpush1.msra.mxu0 %v677
          %711 = vmatprep.subr.mxu0 0.0
          %712 = vmatpush1.msra.mxu0 %v678
          %713 = vmatprep.subr.mxu0 0.0
          %714 = vmatpush1.msra.mxu0 %v679
          %715 = vmatprep.subr.mxu0 0.0
          %716 = vmatpush1.msra.mxu0 %v680
          %717 = vmatprep.subr.mxu0 0.0
          %718 = vmatpush1.msra.mxu0 %v681
          %719 = vmatprep.subr.mxu0 0.0
          %720 = vmatpush1.msra.mxu0 %v682
          %721 = vmatprep.subr.mxu0 0.0
          %722 = vmatpush1.msra.mxu0 %v683
          %723 = vmatprep.subr.mxu0 0.0
          %724 = vmatpush1.msra.mxu0 0.0
          %725 = vmatprep.subr.mxu0 0.0
          %726 = vmatpush1.msra.mxu0 0.0
          %727 = vmatprep.subr.mxu0 0.0
          %728 = vmatpush1.msra.mxu0 0.0
          %729 = vmatprep.subr.mxu0 0.0
          %730 = vmatpush1.msra.mxu0 0.0
          %731 = vmatprep.subr.mxu0 0.0
          %732 = vmatpush1.msra.mxu0 0.0
          %733 = vmatprep.subr.mxu0 0.0
          %734 = vmatpush1.msra.mxu0 0.0
          %735 = vmatprep.subr.mxu0 0.0
          %736 = vmatpush1.msra.mxu0 0.0
          %737 = vmatprep.subr.mxu0 0.0
          %738 = vmatpush1.msra.mxu0 0.0
          %739 = vmatprep.subr.mxu0 0.0
          %740 = vmatpush1.msra.mxu0 0.0
          %741 = vmatprep.subr.mxu0 0.0
          %742 = vmatpush1.msra.mxu0 0.0
          %743 = vmatprep.subr.mxu0 0.0
          %744 = vmatpush1.msra.mxu0 0.0
          %745 = vmatprep.subr.mxu0 0.0
          %746 = vmatpush1.msra.mxu0 0.0
          %747 = vmatprep.subr.mxu0 0.0
          %748 = vmatpush1.msra.mxu0 0.0
          %749 = vmatprep.subr.mxu0 0.0
          %750 = vmatpush1.msra.mxu0 0.0
          %751 = vmatprep.subr.mxu0 0.0
          %752 = vmatpush1.msra.mxu0 0.0
          %753 = vmatprep.subr.mxu0 0.0
          %754 = vmatpush1.msra.mxu0 0.0
          %755 = vmatprep.mubr.f32.mxu0 0.0
          %756 = vmatmul.mubr.f32.gmra.mrb[0].mxu0 %v667
          %v757 = vpop.f32.mrb[0].mxu0
          %v758 = vadd.f32 %v689, %v757
          %v759 = vpop.f32.mrb[0].mxu0
          %760 = vdwg.mxu0
          %vm761 = vcmp.gt.f32.partialorder %v758, 0.0
          %v762 = vmul.f32 %v758, 0.01
          %v763 = vsel %vm761, %v758, %v762
          %v764 = vld [vmem:[%s6] sm:$0xff]
          %v765 = vld [vmem:[%s6 + $0x8] sm:$0xff]
          %v766 = vld [vmem:[%s6 + $0x10] sm:$0xff]
          %v767 = vld [vmem:[%s6 + $0x18] sm:$0xff]
          %v768 = vld [vmem:[%s6 + $0x20] sm:$0xff]
          %v769 = vld [vmem:[%s6 + $0x28] sm:$0xff]
          %v770 = vld [vmem:[%s6 + $0x30] sm:$0xff]
          %v771 = vld [vmem:[%s6 + $0x38] sm:$0xff]
          %v772 = vld [vmem:[%s6 + $0x40] sm:$0xff]
          %v773 = vld [vmem:[%s6 + $0x48] sm:$0xff]
          %v774 = vld [vmem:[%s6 + $0x50] sm:$0xff]
          %v775 = vld [vmem:[%s6 + $0x58] sm:$0xff]
          %v776 = vld [vmem:[%s6 + $0x60] sm:$0xff]
          %v777 = vld [vmem:[%s6 + $0x68] sm:$0xff]
          %v778 = vld [vmem:[%s6 + $0x70] sm:$0xff]
          %v779 = vld [vmem:[%s6 + $0x78] sm:$0xff]
          %v780 = vld [vmem:[%s7] sm:$0x1]
          %v782 = vlaneseq
          %v783 = vshrl.u32 %v782, 7
          %v784 = vsub.s32 0, %v783
          %v785 = vrot.slane %v780, %v784
          %787 = vmatprep.subr.mxu0 0.0
          %788 = vmatpush1.msra.mxu0 %v764
          %789 = vmatprep.subr.mxu0 0.0
          %790 = vmatpush1.msra.mxu0 %v765
          %791 = vmatprep.subr.mxu0 0.0
          %792 = vmatpush1.msra.mxu0 %v766
          %793 = vmatprep.subr.mxu0 0.0
          %794 = vmatpush1.msra.mxu0 %v767
          %795 = vmatprep.subr.mxu0 0.0
          %796 = vmatpush1.msra.mxu0 %v768
          %797 = vmatprep.subr.mxu0 0.0
          %798 = vmatpush1.msra.mxu0 %v769
          %799 = vmatprep.subr.mxu0 0.0
          %800 = vmatpush1.msra.mxu0 %v770
          %801 = vmatprep.subr.mxu0 0.0
          %802 = vmatpush1.msra.mxu0 %v771
          %803 = vmatprep.subr.mxu0 0.0
          %804 = vmatpush1.msra.mxu0 %v772
          %805 = vmatprep.subr.mxu0 0.0
          %806 = vmatpush1.msra.mxu0 %v773
          %807 = vmatprep.subr.mxu0 0.0
          %808 = vmatpush1.msra.mxu0 %v774
          %809 = vmatprep.subr.mxu0 0.0
          %810 = vmatpush1.msra.mxu0 %v775
          %811 = vmatprep.subr.mxu0 0.0
          %812 = vmatpush1.msra.mxu0 %v776
          %813 = vmatprep.subr.mxu0 0.0
          %814 = vmatpush1.msra.mxu0 %v777
          %815 = vmatprep.subr.mxu0 0.0
          %816 = vmatpush1.msra.mxu0 %v778
          %817 = vmatprep.subr.mxu0 0.0
          %818 = vmatpush1.msra.mxu0 %v779
          %819 = vmatprep.subr.mxu0 0.0
          %820 = vmatpush1.msra.mxu0 0.0
          %821 = vmatprep.subr.mxu0 0.0
          %822 = vmatpush1.msra.mxu0 0.0
          %823 = vmatprep.subr.mxu0 0.0
          %824 = vmatpush1.msra.mxu0 0.0
          %825 = vmatprep.subr.mxu0 0.0
          %826 = vmatpush1.msra.mxu0 0.0
          %827 = vmatprep.subr.mxu0 0.0
          %828 = vmatpush1.msra.mxu0 0.0
          %829 = vmatprep.subr.mxu0 0.0
          %830 = vmatpush1.msra.mxu0 0.0
          %831 = vmatprep.subr.mxu0 0.0
          %832 = vmatpush1.msra.mxu0 0.0
          %833 = vmatprep.subr.mxu0 0.0
          %834 = vmatpush1.msra.mxu0 0.0
          %835 = vmatprep.subr.mxu0 0.0
          %836 = vmatpush1.msra.mxu0 0.0
          %837 = vmatprep.subr.mxu0 0.0
          %838 = vmatpush1.msra.mxu0 0.0
          %839 = vmatprep.subr.mxu0 0.0
          %840 = vmatpush1.msra.mxu0 0.0
          %841 = vmatprep.subr.mxu0 0.0
          %842 = vmatpush1.msra.mxu0 0.0
          %843 = vmatprep.subr.mxu0 0.0
          %844 = vmatpush1.msra.mxu0 0.0
          %845 = vmatprep.subr.mxu0 0.0
          %846 = vmatpush1.msra.mxu0 0.0
          %847 = vmatprep.subr.mxu0 0.0
          %848 = vmatpush1.msra.mxu0 0.0
          %849 = vmatprep.subr.mxu0 0.0
          %850 = vmatpush1.msra.mxu0 0.0
          %851 = vmatprep.mubr.f32.mxu0 0.0
          %852 = vmatmul.mubr.f32.gmra.mrb[0].mxu0 %v763
          %v853 = vpop.f32.mrb[0].mxu0
          %v854 = vadd.f32 %v785, %v853
          %v855 = vpop.f32.mrb[0].mxu0
          %856 = vdwg.mxu0
          %v857 = vtanh.pop %v854
          %vm858 = vcmask 31744
          %859 = vst.msk [vmem:[%s306] sm:$0xff] %vm858, %v857
        $region68: #{tpu_custom_call.1} parent=47 // pred_fallthru
          _
        %s860 = smul.u32 %s25, %s26
        %p861 = scmp.lt.s32.totalorder %s860, 0
        %s862 = scalar_select %p861, %s860, 0
        %s863 = smul.addr %s862, 8
        %s864 = scalar_lea.vmem %s8, %s863
        // Predicated region
        $region69: #{tpu_custom_call.1} parent=47 // pred_check
          %p865 = pneg %p205
        $region70: #{tpu_custom_call.1} parent=47 // pred_check_branch
          %867 = sbr.rel (%p865) target = $region72
        $region71: #{tpu_custom_call.1} parent=47 // pred_region
          %s868 = smul.u32 %s25, %s26
        $region72: #{tpu_custom_call.1} parent=47 // pred_fallthru
          _
      $region48: #{tpu_custom_call.1} parent=5 // pred_fallthru
        _
      %p869 = scmp.le.s32.totalorder 2, %s16
      // Predicated region
      $region73: #{tpu_custom_call.1} parent=5 // pred_check
        %p870 = pneg %p869
      $region74: #{tpu_custom_call.1} parent=5 // pred_check_branch
        %872 = sbr.rel (%p870) target = $region76
      $region75: #{tpu_custom_call.1} parent=5 // pred_region
        %s873 = ssub.s32 %s16, 2
        // Predicated region
        $region77: #{tpu_custom_call.1} parent=75 // pred_check
          %p874 = pneg %p211
        $region78: #{tpu_custom_call.1} parent=75 // pred_check_branch
          %876 = sbr.rel (%p874) target = $region80
        $region79: #{tpu_custom_call.1} parent=75 // pred_region
          %s877 = smul.u32 %s27, %s28
          %p878 = scmp.lt.s32.totalorder %s877, 0
          %s879 = scalar_select %p878, %s877, 0
          %s880 = smul.addr %s879, 8
          %s881 = scalar_lea.vmem %s8, %s880
        $region80: #{tpu_custom_call.1} parent=75 // pred_fallthru
          _
      $region76: #{tpu_custom_call.1} parent=5 // pred_fallthru
        _
    $region6: #{tpu_custom_call.1} parent=1 // loop_footer
      %s20 = sadd.s32 1, %s16
    $region7: #{tpu_custom_call.1} parent=1 // loop_footer_branch
      %15 = sbr.rel target = $region3
    $region8: #{tpu_custom_call.1} parent=1 // loop_exit
      _
    %882 = vsyncpa [#allocation10], 1
    %s883 = scalar_lea.sflag [#allocation10], 1
    %884 = vsyncpa %s883, 1

</llo_original>
